<compile_context>
chip_gen: v6e
topology: v6e:2x2x1
jax: 0.10.0
libtpu: 0.0.40
codegen_flags: <defaults>
</compile_context>

<pallas_src>
import jax
import jax.numpy as jnp
from jax.experimental import pallas as pl
from jax.experimental.pallas import tpu as pltpu

IN_REAL = 784       # 28*28 real input features (DMA'd as-is, no HBM padding)
IN_PAD = 896        # 7*128: lane-dense K for the fc1 dot (padded in VMEM only)
HID_PAD = 128       # 64 padded up to 128
OUT_PAD = 128       # 10 padded up to 128
NEG_BIG = -1e30     # fill for padded logit lanes (masked out of log_softmax)
TB_MAX = 1024       # max batch rows per grid step


def _net_kernel(x_ref, w1_ref, b1_ref, w2_ref, b2_ref, w3_ref, b3_ref,
                w4_ref, b4_ref, o_ref, xpad_ref):
    tb, inp = xpad_ref.shape
    # bf16 cast + zero-pad to 896 lanes in VMEM (no extra HBM pass over x).
    # Padding lanes are re-zeroed every step: cheap (112 lanes) and safe under
    # megacore grid splitting (no reliance on program_id == 0 init).
    xpad_ref[:, IN_REAL:] = jnp.zeros((tb, inp - IN_REAL), jnp.bfloat16)
    xpad_ref[:, :IN_REAL] = x_ref[...].astype(jnp.bfloat16)

    # fc1 + relu (bf16 MXU inputs, f32 accumulate / elementwise)
    h = jnp.dot(xpad_ref[...], w1_ref[...],
                preferred_element_type=jnp.float32) + b1_ref[...]
    h = jnp.maximum(h, 0.0).astype(jnp.bfloat16)
    # fc2 + relu
    h = jnp.dot(h, w2_ref[...],
                preferred_element_type=jnp.float32) + b2_ref[...]
    h = jnp.maximum(h, 0.0).astype(jnp.bfloat16)
    # fc3 + relu
    h = jnp.dot(h, w3_ref[...],
                preferred_element_type=jnp.float32) + b3_ref[...]
    h = jnp.maximum(h, 0.0).astype(jnp.bfloat16)
    # fc4 (no relu). Padded lanes get NEG_BIG via b4 so they don't affect lse.
    logits = jnp.dot(h, w4_ref[...],
                     preferred_element_type=jnp.float32) + b4_ref[...]
    # log_softmax over dim=1 (numerically stable, f32)
    m = jnp.max(logits, axis=1, keepdims=True)
    shifted = logits - m
    lse = jnp.log(jnp.sum(jnp.exp(shifted), axis=1, keepdims=True))
    o_ref[...] = shifted - lse


def pack_params(params):
    """One-time packing: transpose to (in,out), zero-pad to lane-dense shapes,
    cast weights to bf16. Biases stay f32; padded b4 lanes get NEG_BIG."""
    def pad_w(w_t, in_pad, out_pad):
        in_f, out_f = w_t.shape
        return jnp.pad(w_t, ((0, in_pad - in_f), (0, out_pad - out_f))
                       ).astype(jnp.bfloat16)

    def pad_b(b, out_pad, fill=0.0):
        out_f = b.shape[0]
        return jnp.pad(b, (0, out_pad - out_f), constant_values=fill
                       ).reshape(1, out_pad).astype(jnp.float32)

    return {
        "w1": pad_w(params["w1"].T, IN_PAD, HID_PAD),
        "w2": pad_w(params["w2"].T, HID_PAD, HID_PAD),
        "w3": pad_w(params["w3"].T, HID_PAD, HID_PAD),
        "w4": pad_w(params["w4"].T, HID_PAD, OUT_PAD),
        "b1": pad_b(params["b1"], HID_PAD),
        "b2": pad_b(params["b2"], HID_PAD),
        "b3": pad_b(params["b3"], HID_PAD),
        "b4": pad_b(params["b4"], OUT_PAD, fill=NEG_BIG),
    }


def _round_up(x, m):
    return ((x + m - 1) // m) * m


def _choose_tb(batch):
    """Batch-tile rows: large tiles to amortize per-step overhead, >=4 grid
    steps when the batch allows (v7x megacore), clamped for small batches."""
    if batch <= 8:
        return batch                                   # block == full array
    tb = max(256, _round_up(-(-batch // 4), 8))        # aim for >= 4 steps
    tb = min(tb, TB_MAX, max(8, (batch // 8) * 8))     # never exceed batch
    return tb


@jax.jit
def net_forward(x, packed):
    """x: (B, 784) float32. packed: output of pack_params."""
    B, D = x.shape
    tb = _choose_tb(B)
    n_tiles = -(-B // tb)

    mxu_k = IN_PAD * HID_PAD + 2 * HID_PAD * HID_PAD + HID_PAD * OUT_PAD
    flops = 2 * B * mxu_k
    bytes_accessed = (B * D * 4            # x (f32, unpadded)
                      + mxu_k * 2          # weights (bf16)
                      + 4 * HID_PAD * 4    # biases (f32)
                      + B * OUT_PAD * 4)   # output (f32, 128 lanes)
    cost = pl.CostEstimate(flops=flops,
                           transcendentals=B * (OUT_PAD + 1),  # exp(128)+log
                           bytes_accessed=bytes_accessed)

    const = lambda i: (0, 0)   # weights/biases: same block every step (resident)
    out = pl.pallas_call(
        _net_kernel,
        out_shape=jax.ShapeDtypeStruct((B, OUT_PAD), jnp.float32),
        grid=(n_tiles,),
        in_specs=[
            pl.BlockSpec((tb, D), lambda i: (i, 0)),          # x tile (f32, 784)
            pl.BlockSpec((IN_PAD, HID_PAD), const),           # w1
            pl.BlockSpec((1, HID_PAD), const),                # b1
            pl.BlockSpec((HID_PAD, HID_PAD), const),          # w2
            pl.BlockSpec((1, HID_PAD), const),                # b2
            pl.BlockSpec((HID_PAD, HID_PAD), const),          # w3
            pl.BlockSpec((1, HID_PAD), const),                # b3
            pl.BlockSpec((HID_PAD, OUT_PAD), const),          # w4
            pl.BlockSpec((1, OUT_PAD), const),                # b4
        ],
        out_specs=pl.BlockSpec((tb, OUT_PAD), lambda i: (i, 0)),
        scratch_shapes=[pltpu.VMEM((tb, IN_PAD), jnp.bfloat16)],  # x staging
        compiler_params=pltpu.CompilerParams(
            dimension_semantics=("parallel",),        # megacore split on v7x
            vmem_limit_bytes=32 * 1024 * 1024,
        ),
        cost_estimate=cost,
    )(x, packed["w1"], packed["b1"], packed["w2"], packed["b2"],
      packed["w3"], packed["b3"], packed["w4"], packed["b4"])
    # Drop padded logit lanes. (Fold into the consumer in a real pipeline.)
    return out[:, :10]


def init_params(key):
    """Deterministic init matching PyTorch nn.Linear default U(-1/sqrt(fan_in), ...)."""
    dims = [(64, 784), (64, 64), (64, 64), (10, 64)]
    params = {}
    for i, (out_f, in_f) in enumerate(dims, start=1):
        key, kw, kb = jax.random.split(key, 3)
        bound = 1.0 / jnp.sqrt(float(in_f))
        params[f"w{i}"] = jax.random.uniform(
            kw, (out_f, in_f), jnp.float32, minval=-bound, maxval=bound)
        params[f"b{i}"] = jax.random.uniform(
            kb, (out_f,), jnp.float32, minval=-bound, maxval=bound)
    return params


def net_reference(x, params):
    """Pure-JAX f32 reference of the PyTorch forward for verification."""
    h = jnp.maximum(x @ params["w1"].T + params["b1"], 0.0)
    h = jnp.maximum(h @ params["w2"].T + params["b2"], 0.0)
    h = jnp.maximum(h @ params["w3"].T + params["b3"], 0.0)
    logits = h @ params["w4"].T + params["b4"]
    return jax.nn.log_softmax(logits, axis=1)


if __name__ == "__main__":
    key = jax.random.PRNGKey(0)
    key, kx = jax.random.split(key)
    B = 8
    x = jax.random.normal(kx, (B, 28 * 28), jnp.float32)
    params = init_params(key)
    packed = pack_params(params)          # one-time packing, hoisted out of forward

    out = net_forward(x, packed)
    out = jax.block_until_ready(out)

    ref = net_reference(x, params)
    assert out.shape == (B, 10)
    # bf16 weights/activations with f32 accumulation: loose-but-tight-enough tol.
    assert jnp.allclose(out, ref, atol=5e-2, rtol=5e-2), "mismatch vs reference"
    # Rows of log_softmax must sum to 1 in prob space.
    assert jnp.allclose(jnp.sum(jnp.exp(out), axis=1), 1.0, atol=1e-3)
    print("KERNEL_OK")
</pallas_src>

<mosaic_0001>
module attributes {stable_mosaic.version = 11 : i64} {
  func.func @_net_kernel(%arg0: i32, %arg1: memref<8x784xf32, #tpu.memory_space<vmem>>, %arg2: memref<896x128xbf16, #tpu.memory_space<vmem>>, %arg3: memref<1x128xf32, #tpu.memory_space<vmem>>, %arg4: memref<128x128xbf16, #tpu.memory_space<vmem>>, %arg5: memref<1x128xf32, #tpu.memory_space<vmem>>, %arg6: memref<128x128xbf16, #tpu.memory_space<vmem>>, %arg7: memref<1x128xf32, #tpu.memory_space<vmem>>, %arg8: memref<128x128xbf16, #tpu.memory_space<vmem>>, %arg9: memref<1x128xf32, #tpu.memory_space<vmem>>, %arg10: memref<8x128xf32, #tpu.memory_space<vmem>>, %arg11: memref<8x896xbf16, #tpu.memory_space<vmem>>) attributes {dimension_semantics = [#tpu.dimension_semantics<parallel>], iteration_bounds = array<i64: 1>, scalar_prefetch = 0 : i64, scratch_operands = 1 : i64, tpu.core_type = #tpu.core_type<tc>, window_params = [{transform_indices = @transform_0, window_bounds = array<i64: 8, 784>}, {pipeline_mode = #tpu.pipeline_mode<synchronous>, transform_indices = @transform_1, window_bounds = array<i64: 896, 128>}, {pipeline_mode = #tpu.pipeline_mode<synchronous>, transform_indices = @transform_2, window_bounds = array<i64: 1, 128>}, {pipeline_mode = #tpu.pipeline_mode<synchronous>, transform_indices = @transform_3, window_bounds = array<i64: 128, 128>}, {pipeline_mode = #tpu.pipeline_mode<synchronous>, transform_indices = @transform_4, window_bounds = array<i64: 1, 128>}, {pipeline_mode = #tpu.pipeline_mode<synchronous>, transform_indices = @transform_5, window_bounds = array<i64: 128, 128>}, {pipeline_mode = #tpu.pipeline_mode<synchronous>, transform_indices = @transform_6, window_bounds = array<i64: 1, 128>}, {pipeline_mode = #tpu.pipeline_mode<synchronous>, transform_indices = @transform_7, window_bounds = array<i64: 128, 128>}, {pipeline_mode = #tpu.pipeline_mode<synchronous>, transform_indices = @transform_8, window_bounds = array<i64: 1, 128>}, {transform_indices = @transform_9, window_bounds = array<i64: 8, 128>}]} {
    %cst = arith.constant 0.000000e+00 : bf16
    %0 = vector.broadcast %cst : bf16 to vector<8x112xbf16>
    %c0 = arith.constant 0 : index
    %c784 = arith.constant 784 : index
    %1 = vector.load %arg11[%c0, %c784] : memref<8x896xbf16, #tpu.memory_space<vmem>>, vector<8x112xbf16>
    tpu.vector_store %arg11[%c0, %c784], %0 {strides = array<i32>} : memref<8x896xbf16, #tpu.memory_space<vmem>>, vector<8x112xbf16>,
    %c0_0 = arith.constant 0 : index
    %c0_1 = arith.constant 0 : index
    %2 = vector.load %arg1[%c0_0, %c0_1] : memref<8x784xf32, #tpu.memory_space<vmem>>, vector<8x784xf32>
    %3 = arith.truncf %2 : vector<8x784xf32> to vector<8x784xbf16>
    %c0_2 = arith.constant 0 : index
    %c0_3 = arith.constant 0 : index
    %4 = vector.load %arg11[%c0_2, %c0_3] : memref<8x896xbf16, #tpu.memory_space<vmem>>, vector<8x784xbf16>
    tpu.vector_store %arg11[%c0_2, %c0_3], %3 {strides = array<i32>} : memref<8x896xbf16, #tpu.memory_space<vmem>>, vector<8x784xbf16>,
    %c0_4 = arith.constant 0 : index
    %c0_5 = arith.constant 0 : index
    %5 = vector.load %arg11[%c0_4, %c0_5] : memref<8x896xbf16, #tpu.memory_space<vmem>>, vector<8x896xbf16>
    %c0_6 = arith.constant 0 : index
    %c0_7 = arith.constant 0 : index
    %6 = vector.load %arg2[%c0_6, %c0_7] : memref<896x128xbf16, #tpu.memory_space<vmem>>, vector<896x128xbf16>
    %cst_8 = arith.constant dense<0.000000e+00> : vector<8x128xf32>
    %7 = tpu.matmul %5, %6, %cst_8 {dimension_numbers = #tpu.dot_dimension_numbers<[1], [0], [0], [1], [0, 0, 1, 1], [], []>} : vector<8x896xbf16>, vector<896x128xbf16>, vector<8x128xf32> -> vector<8x128xf32>
    %c0_9 = arith.constant 0 : index
    %c0_10 = arith.constant 0 : index
    %8 = vector.load %arg3[%c0_9, %c0_10] : memref<1x128xf32, #tpu.memory_space<vmem>>, vector<1x128xf32>
    %9 = vector.broadcast %8 : vector<1x128xf32> to vector<8x128xf32>
    %10 = arith.addf %7, %9 : vector<8x128xf32>
    %cst_11 = arith.constant 0.000000e+00 : f32
    %11 = vector.broadcast %cst_11 : f32 to vector<8x128xf32>
    %12 = arith.maximumf %10, %11 : vector<8x128xf32>
    %13 = arith.truncf %12 : vector<8x128xf32> to vector<8x128xbf16>
    %c0_12 = arith.constant 0 : index
    %c0_13 = arith.constant 0 : index
    %14 = vector.load %arg4[%c0_12, %c0_13] : memref<128x128xbf16, #tpu.memory_space<vmem>>, vector<128x128xbf16>
    %cst_14 = arith.constant dense<0.000000e+00> : vector<8x128xf32>
    %15 = tpu.matmul %13, %14, %cst_14 {dimension_numbers = #tpu.dot_dimension_numbers<[1], [0], [0], [1], [0, 0, 1, 1], [], []>} : vector<8x128xbf16>, vector<128x128xbf16>, vector<8x128xf32> -> vector<8x128xf32>
    %c0_15 = arith.constant 0 : index
    %c0_16 = arith.constant 0 : index
    %16 = vector.load %arg5[%c0_15, %c0_16] : memref<1x128xf32, #tpu.memory_space<vmem>>, vector<1x128xf32>
    %17 = vector.broadcast %16 : vector<1x128xf32> to vector<8x128xf32>
    %18 = arith.addf %15, %17 : vector<8x128xf32>
    %cst_17 = arith.constant 0.000000e+00 : f32
    %19 = vector.broadcast %cst_17 : f32 to vector<8x128xf32>
    %20 = arith.maximumf %18, %19 : vector<8x128xf32>
    %21 = arith.truncf %20 : vector<8x128xf32> to vector<8x128xbf16>
    %c0_18 = arith.constant 0 : index
    %c0_19 = arith.constant 0 : index
    %22 = vector.load %arg6[%c0_18, %c0_19] : memref<128x128xbf16, #tpu.memory_space<vmem>>, vector<128x128xbf16>
    %cst_20 = arith.constant dense<0.000000e+00> : vector<8x128xf32>
    %23 = tpu.matmul %21, %22, %cst_20 {dimension_numbers = #tpu.dot_dimension_numbers<[1], [0], [0], [1], [0, 0, 1, 1], [], []>} : vector<8x128xbf16>, vector<128x128xbf16>, vector<8x128xf32> -> vector<8x128xf32>
    %c0_21 = arith.constant 0 : index
    %c0_22 = arith.constant 0 : index
    %24 = vector.load %arg7[%c0_21, %c0_22] : memref<1x128xf32, #tpu.memory_space<vmem>>, vector<1x128xf32>
    %25 = vector.broadcast %24 : vector<1x128xf32> to vector<8x128xf32>
    %26 = arith.addf %23, %25 : vector<8x128xf32>
    %cst_23 = arith.constant 0.000000e+00 : f32
    %27 = vector.broadcast %cst_23 : f32 to vector<8x128xf32>
    %28 = arith.maximumf %26, %27 : vector<8x128xf32>
    %29 = arith.truncf %28 : vector<8x128xf32> to vector<8x128xbf16>
    %c0_24 = arith.constant 0 : index
    %c0_25 = arith.constant 0 : index
    %30 = vector.load %arg8[%c0_24, %c0_25] : memref<128x128xbf16, #tpu.memory_space<vmem>>, vector<128x128xbf16>
    %cst_26 = arith.constant dense<0.000000e+00> : vector<8x128xf32>
    %31 = tpu.matmul %29, %30, %cst_26 {dimension_numbers = #tpu.dot_dimension_numbers<[1], [0], [0], [1], [0, 0, 1, 1], [], []>} : vector<8x128xbf16>, vector<128x128xbf16>, vector<8x128xf32> -> vector<8x128xf32>
    %c0_27 = arith.constant 0 : index
    %c0_28 = arith.constant 0 : index
    %32 = vector.load %arg9[%c0_27, %c0_28] : memref<1x128xf32, #tpu.memory_space<vmem>>, vector<1x128xf32>
    %33 = vector.broadcast %32 : vector<1x128xf32> to vector<8x128xf32>
    %34 = arith.addf %31, %33 : vector<8x128xf32>
    %cst_29 = arith.constant dense<0xFF800000> : vector<8xf32>
    %35 = vector.multi_reduction <maximumf>, %34, %cst_29 [1] : vector<8x128xf32> to vector<8xf32>
    %36 = vector.shape_cast %35 : vector<8xf32> to vector<8x1xf32>
    %37 = vector.broadcast %36 : vector<8x1xf32> to vector<8x128xf32>
    %38 = arith.subf %34, %37 : vector<8x128xf32>
    %39 = math.exp %38 : vector<8x128xf32>
    %cst_30 = arith.constant dense<0.000000e+00> : vector<8xf32>
    %40 = vector.multi_reduction <add>, %39, %cst_30 [1] : vector<8x128xf32> to vector<8xf32>
    %41 = vector.shape_cast %40 : vector<8xf32> to vector<8x1xf32>
    %42 = math.log %41 : vector<8x1xf32>
    %43 = vector.broadcast %42 : vector<8x1xf32> to vector<8x128xf32>
    %44 = arith.subf %38, %43 : vector<8x128xf32>
    %c0_31 = arith.constant 0 : index
    %c0_32 = arith.constant 0 : index
    %45 = vector.load %arg10[%c0_31, %c0_32] : memref<8x128xf32, #tpu.memory_space<vmem>>, vector<8x128xf32>
    tpu.vector_store %arg10[%c0_31, %c0_32], %44 {strides = array<i32>} : memref<8x128xf32, #tpu.memory_space<vmem>>, vector<8x128xf32>,
    return
  }
  func.func @transform_0(%arg0: i32) -> (i32, i32) {
    %c0_i32 = arith.constant 0 : i32
    %c0_i32_0 = arith.constant 0 : i32
    return %arg0, %c0_i32 : i32, i32
  }
  func.func @transform_1(%arg0: i32) -> (i32, i32) {
    %c0_i32 = arith.constant 0 : i32
    %c0_i32_0 = arith.constant 0 : i32
    %c0_i32_1 = arith.constant 0 : i32
    return %c0_i32, %c0_i32_0 : i32, i32
  }
  func.func @transform_2(%arg0: i32) -> (i32, i32) {
    %c0_i32 = arith.constant 0 : i32
    %c0_i32_0 = arith.constant 0 : i32
    %c0_i32_1 = arith.constant 0 : i32
    return %c0_i32, %c0_i32_0 : i32, i32
  }
  func.func @transform_3(%arg0: i32) -> (i32, i32) {
    %c0_i32 = arith.constant 0 : i32
    %c0_i32_0 = arith.constant 0 : i32
    %c0_i32_1 = arith.constant 0 : i32
    return %c0_i32, %c0_i32_0 : i32, i32
  }
  func.func @transform_4(%arg0: i32) -> (i32, i32) {
    %c0_i32 = arith.constant 0 : i32
    %c0_i32_0 = arith.constant 0 : i32
    %c0_i32_1 = arith.constant 0 : i32
    return %c0_i32, %c0_i32_0 : i32, i32
  }
  func.func @transform_5(%arg0: i32) -> (i32, i32) {
    %c0_i32 = arith.constant 0 : i32
    %c0_i32_0 = arith.constant 0 : i32
    %c0_i32_1 = arith.constant 0 : i32
    return %c0_i32, %c0_i32_0 : i32, i32
  }
  func.func @transform_6(%arg0: i32) -> (i32, i32) {
    %c0_i32 = arith.constant 0 : i32
    %c0_i32_0 = arith.constant 0 : i32
    %c0_i32_1 = arith.constant 0 : i32
    return %c0_i32, %c0_i32_0 : i32, i32
  }
  func.func @transform_7(%arg0: i32) -> (i32, i32) {
    %c0_i32 = arith.constant 0 : i32
    %c0_i32_0 = arith.constant 0 : i32
    %c0_i32_1 = arith.constant 0 : i32
    return %c0_i32, %c0_i32_0 : i32, i32
  }
  func.func @transform_8(%arg0: i32) -> (i32, i32) {
    %c0_i32 = arith.constant 0 : i32
    %c0_i32_0 = arith.constant 0 : i32
    %c0_i32_1 = arith.constant 0 : i32
    return %c0_i32, %c0_i32_0 : i32, i32
  }
  func.func @transform_9(%arg0: i32) -> (i32, i32) {
    %c0_i32 = arith.constant 0 : i32
    %c0_i32_0 = arith.constant 0 : i32
    return %arg0, %c0_i32 : i32, i32
  }
}

</mosaic_0001>

<llo_original>
// kernel: net_forward.1
$region0: #{net_forward.1}
  #allocation0 [shape = 'u32[]', space=smem, size = 0x4, offset = 0x4, fixed_abs, tag = 'smem constant byte address 0x4 - core index']
  #allocation1 [shape = 'u32[144,128]{1,0:T(1,128)}', space=vmem, size = 0x12000, scoped, tag = 'internal scratch']
  #allocation2 [shape = 'bf16[8,896]{1,0:T(8,128)(2,1)}', space=vmem, size = 0x3800, scoped, tag = 'scratch operand']
  %s0 = inlined_call_operand.hbm [shape: f32[8,784], index: 0, kind: input, shape index: {}]
  %s1 = inlined_call_operand.hbm [shape: bf16[896,128], index: 1, kind: input, shape index: {}]
  %s2 = inlined_call_operand.vmem [shape: f32[1,128], index: 2, kind: input, shape index: {}]
  %s3 = inlined_call_operand.hbm [shape: bf16[128,128], index: 3, kind: input, shape index: {}]
  %s4 = inlined_call_operand.vmem [shape: f32[1,128], index: 4, kind: input, shape index: {}]
  %s5 = inlined_call_operand.hbm [shape: bf16[128,128], index: 5, kind: input, shape index: {}]
  %s6 = inlined_call_operand.vmem [shape: f32[1,128], index: 6, kind: input, shape index: {}]
  %s7 = inlined_call_operand.hbm [shape: bf16[128,128], index: 7, kind: input, shape index: {}]
  %s8 = inlined_call_operand.vmem [shape: f32[1,128], index: 8, kind: input, shape index: {}]
  %s9 = inlined_call_operand.hbm [shape: f32[8,128], index: 9, kind: output, shape index: {}]
  %s10 = sld [smem:[#allocation0]]
  $region66: #{net_forward.1} parent=0
    _
  %s12 = ssub.s32 1, %s10
  %s13 = scalar_select 0, %s12, %s10
  $region1: #{net_forward.1} parent=0
    #allocation3 [shape = 'u8[28672]{0}', space=vmem, size = 0x7000, scoped, tag = 'input window, operand 0, single buffered']
    #allocation4 [shape = 's32[1]{0}', space=sflag, size = 0x4, scoped, tag = 'scoped memory for net_forward.1']
    #allocation5 [shape = 's32[1]{0}', space=sflag, size = 0x4, scoped, tag = 'scoped memory for net_forward.1']
    #allocation6 [shape = 'u8[229376]{0}', space=vmem, size = 0x38000, scoped, tag = 'input window, operand 1, single buffered']
    #allocation7 [shape = 's32[1]{0}', space=sflag, size = 0x4, scoped, tag = 'scoped memory for net_forward.1']
    #allocation8 [shape = 'u8[32768]{0}', space=vmem, size = 0x8000, scoped, tag = 'input window, operand 3, single buffered']
    #allocation9 [shape = 'u8[32768]{0}', space=vmem, size = 0x8000, scoped, tag = 'input window, operand 5, single buffered']
    #allocation10 [shape = 's32[1]{0}', space=sflag, size = 0x4, scoped, tag = 'scoped memory for net_forward.1']
    #allocation11 [shape = 'u8[32768]{0}', space=vmem, size = 0x8000, scoped, tag = 'input window, operand 7, single buffered']
    #allocation12 [shape = 'u8[4096]{0}', space=vmem, size = 0x1000, scoped, tag = 'output window, operand 0, single buffered']
    %14 = vsyncpa [#allocation4], 0
    %15 = vsyncpa [#allocation7], 0
    %16 = vsyncpa [#allocation10], 0
    %17 = vsyncpa [#allocation5], 0
    // Predicated region
    $region2: #{net_forward.1} parent=1 // pred_check
      _
    $region3: #{net_forward.1} parent=1 // pred_check_branch
      %19 = sbr.rel (0) target = $region5
    $region4: #{net_forward.1} parent=1 // pred_region
      %s21 = ssub.s32 896, 896
      %22 = vsyncadd [#allocation4], %s21
      %s24 = sshll.u32 [#allocation3], 4
      %s25 = int_to_ptr.vmem [resolvable:$true] %s24
      %27 = dma.hbm_to_vmem [thread:$0]  %s0, 896, %s25, [#allocation4]
    $region5: #{net_forward.1} parent=1 // pred_fallthru
      _
    // Predicated region
    $region6: #{net_forward.1} parent=1 // pred_check
      _
    $region7: #{net_forward.1} parent=1 // pred_check_branch
      %29 = sbr.rel (0) target = $region9
    $region8: #{net_forward.1} parent=1 // pred_region
      %s31 = ssub.s32 7168, 7168
      %32 = vsyncadd [#allocation7], %s31
      %s33 = sshll.u32 [#allocation6], 4
      %s34 = int_to_ptr.vmem [resolvable:$true] %s33
      %39 = dma.hbm_to_vmem [thread:$0]  %s1, 7168, %s34, [#allocation7], 64, 64, 4
    $region9: #{net_forward.1} parent=1 // pred_fallthru
      _
    // Predicated region
    $region10: #{net_forward.1} parent=1 // pred_check
      _
    $region11: #{net_forward.1} parent=1 // pred_check_branch
      %41 = sbr.rel (0) target = $region13
    $region12: #{net_forward.1} parent=1 // pred_region
      _
    $region13: #{net_forward.1} parent=1 // pred_fallthru
      _
    // Predicated region
    $region14: #{net_forward.1} parent=1 // pred_check
      _
    $region15: #{net_forward.1} parent=1 // pred_check_branch
      %43 = sbr.rel (0) target = $region17
    $region16: #{net_forward.1} parent=1 // pred_region
      %s45 = ssub.s32 1024, 1024
      %46 = vsyncadd [#allocation7], %s45
      %s47 = sshll.u32 [#allocation8], 4
      %s48 = int_to_ptr.vmem [resolvable:$true] %s47
      %53 = dma.hbm_to_vmem [thread:$0]  %s3, 1024, %s48, [#allocation7], 64, 64, 4
    $region17: #{net_forward.1} parent=1 // pred_fallthru
      _
    // Predicated region
    $region18: #{net_forward.1} parent=1 // pred_check
      _
    $region19: #{net_forward.1} parent=1 // pred_check_branch
      %55 = sbr.rel (0) target = $region21
    $region20: #{net_forward.1} parent=1 // pred_region
      _
    $region21: #{net_forward.1} parent=1 // pred_fallthru
      _
    // Predicated region
    $region22: #{net_forward.1} parent=1 // pred_check
      _
    $region23: #{net_forward.1} parent=1 // pred_check_branch
      %57 = sbr.rel (0) target = $region25
    $region24: #{net_forward.1} parent=1 // pred_region
      %s59 = ssub.s32 1024, 1024
      %60 = vsyncadd [#allocation10], %s59
      %s61 = sshll.u32 [#allocation9], 4
      %s62 = int_to_ptr.vmem [resolvable:$true] %s61
      %67 = dma.hbm_to_vmem [thread:$0]  %s5, 1024, %s62, [#allocation10], 64, 64, 4
    $region25: #{net_forward.1} parent=1 // pred_fallthru
      _
    // Predicated region
    $region26: #{net_forward.1} parent=1 // pred_check
      _
    $region27: #{net_forward.1} parent=1 // pred_check_branch
      %69 = sbr.rel (0) target = $region29
    $region28: #{net_forward.1} parent=1 // pred_region
      _
    $region29: #{net_forward.1} parent=1 // pred_fallthru
      _
    // Predicated region
    $region30: #{net_forward.1} parent=1 // pred_check
      _
    $region31: #{net_forward.1} parent=1 // pred_check_branch
      %71 = sbr.rel (0) target = $region33
    $region32: #{net_forward.1} parent=1 // pred_region
      %s73 = ssub.s32 1024, 1024
      %74 = vsyncadd [#allocation10], %s73
      %s75 = sshll.u32 [#allocation11], 4
      %s76 = int_to_ptr.vmem [resolvable:$true] %s75
      %81 = dma.hbm_to_vmem [thread:$0]  %s7, 1024, %s76, [#allocation10], 64, 64, 4
    $region33: #{net_forward.1} parent=1 // pred_fallthru
      _
    // Predicated region
    $region34: #{net_forward.1} parent=1 // pred_check
      _
    $region35: #{net_forward.1} parent=1 // pred_check_branch
      %83 = sbr.rel (0) target = $region37
    $region36: #{net_forward.1} parent=1 // pred_region
      _
    $region37: #{net_forward.1} parent=1 // pred_fallthru
      _
    // Predicated region
    $region38: #{net_forward.1} parent=1 // pred_check
      _
    $region39: #{net_forward.1} parent=1 // pred_check_branch
      %85 = sbr.rel (0) target = $region41
    $region40: #{net_forward.1} parent=1 // pred_region
      %86 = dma.done [#allocation4], 896
    $region41: #{net_forward.1} parent=1 // pred_fallthru
      _
    // Predicated region
    $region42: #{net_forward.1} parent=1 // pred_check
      _
    $region43: #{net_forward.1} parent=1 // pred_check_branch
      %88 = sbr.rel (0) target = $region45
    $region44: #{net_forward.1} parent=1 // pred_region
      %89 = dma.done [#allocation7], 7168
    $region45: #{net_forward.1} parent=1 // pred_fallthru
      _
    // Predicated region
    $region46: #{net_forward.1} parent=1 // pred_check
      _
    $region47: #{net_forward.1} parent=1 // pred_check_branch
      %91 = sbr.rel (0) target = $region49
    $region48: #{net_forward.1} parent=1 // pred_region
      %92 = dma.done [#allocation7], 1024
    $region49: #{net_forward.1} parent=1 // pred_fallthru
      _
    // Predicated region
    $region50: #{net_forward.1} parent=1 // pred_check
      _
    $region51: #{net_forward.1} parent=1 // pred_check_branch
      %94 = sbr.rel (0) target = $region53
    $region52: #{net_forward.1} parent=1 // pred_region
      %95 = dma.done [#allocation10], 1024
    $region53: #{net_forward.1} parent=1 // pred_fallthru
      _
    // Predicated region
    $region54: #{net_forward.1} parent=1 // pred_check
      _
    $region55: #{net_forward.1} parent=1 // pred_check_branch
      %97 = sbr.rel (0) target = $region57
    $region56: #{net_forward.1} parent=1 // pred_region
      %98 = dma.done [#allocation10], 1024
    $region57: #{net_forward.1} parent=1 // pred_fallthru
      _
    %vm100 = vcmask 1043584
    %101 = vst.msk [vmem:[#allocation2 + $0x18] sm:$0xf] %vm100, 0
    %v102 = vld [vmem:[#allocation3] sm:$0xff]
    %v103 = vld [vmem:[#allocation3 + $0x8] sm:$0xff]
    %v104 = vld [vmem:[#allocation3 + $0x10] sm:$0xff]
    %v105 = vld [vmem:[#allocation3 + $0x18] sm:$0xff]
    %v106 = vld [vmem:[#allocation3 + $0x20] sm:$0xff]
    %v107 = vld [vmem:[#allocation3 + $0x28] sm:$0xff]
    %v108 = vld [vmem:[#allocation3 + $0x30] sm:$0xff]
    %v109 = vpack.c.bf16 %v102, %v102
    %v110 = vpack.c.bf16 %v103, %v103
    %v111 = vpack.c.bf16 %v104, %v104
    %v112 = vpack.c.bf16 %v105, %v105
    %v113 = vpack.c.bf16 %v106, %v106
    %v114 = vpack.c.bf16 %v107, %v107
    %v115 = vpack.c.bf16 %v108, %v108
    %v123 = vunpack.c.l.b16 %v109
    %v124 = vunpack.c.l.b16 %v110
    %v125 = vunpack.c.l.b16 %v111
    %v126 = vunpack.c.l.b16 %v112
    %v127 = vunpack.c.l.b16 %v113
    %v128 = vunpack.c.l.b16 %v114
    %v129 = vunpack.c.l.b16 %v115
    %v130 = vpack.c.b16 %v124, %v123
    %v131 = vpack.c.b16 %v126, %v125
    %v132 = vpack.c.b16 %v128, %v127
    %v133 = vpack.c.b16 %v129, %v129
    %138 = vst [vmem:[#allocation2] sm:$0xff] %v130
    %139 = vst [vmem:[#allocation2 + $0x8] sm:$0xff] %v131
    %140 = vst [vmem:[#allocation2 + $0x10] sm:$0xff] %v132
    %vm141 = vcmask 125952
    %142 = vst.msk [vmem:[#allocation2 + $0x18] sm:$0xf] %vm141, %v133
    %v143 = vld [vmem:[#allocation2] sm:$0xff]
    %v144 = vld [vmem:[#allocation2 + $0x8] sm:$0xff]
    %v145 = vld [vmem:[#allocation2 + $0x10] sm:$0xff]
    %v146 = vld [vmem:[#allocation2 + $0x18] sm:$0xf]
    %v147 = vld [vmem:[#allocation6] sm:$0xf]
    %v148 = vld [vmem:[#allocation6 + $0x4] sm:$0xf]
    %v149 = vld [vmem:[#allocation6 + $0x8] sm:$0xf]
    %v150 = vld [vmem:[#allocation6 + $0xc] sm:$0xf]
    %v151 = vld [vmem:[#allocation6 + $0x10] sm:$0xf]
    %v152 = vld [vmem:[#allocation6 + $0x14] sm:$0xf]
    %v153 = vld [vmem:[#allocation6 + $0x18] sm:$0xf]
    %v154 = vld [vmem:[#allocation6 + $0x1c] sm:$0xf]
    %v155 = vld [vmem:[#allocation6 + $0x20] sm:$0xf]
    %v156 = vld [vmem:[#allocation6 + $0x24] sm:$0xf]
    %v157 = vld [vmem:[#allocation6 + $0x28] sm:$0xf]
    %v158 = vld [vmem:[#allocation6 + $0x2c] sm:$0xf]
    %v159 = vld [vmem:[#allocation6 + $0x30] sm:$0xf]
    %v160 = vld [vmem:[#allocation6 + $0x34] sm:$0xf]
    %v161 = vld [vmem:[#allocation6 + $0x38] sm:$0xf]
    %v162 = vld [vmem:[#allocation6 + $0x3c] sm:$0xf]
    %v163 = vld [vmem:[#allocation6 + $0x40] sm:$0xf]
    %v164 = vld [vmem:[#allocation6 + $0x44] sm:$0xf]
    %v165 = vld [vmem:[#allocation6 + $0x48] sm:$0xf]
    %v166 = vld [vmem:[#allocation6 + $0x4c] sm:$0xf]
    %v167 = vld [vmem:[#allocation6 + $0x50] sm:$0xf]
    %v168 = vld [vmem:[#allocation6 + $0x54] sm:$0xf]
    %v169 = vld [vmem:[#allocation6 + $0x58] sm:$0xf]
    %v170 = vld [vmem:[#allocation6 + $0x5c] sm:$0xf]
    %v171 = vld [vmem:[#allocation6 + $0x60] sm:$0xf]
    %v172 = vld [vmem:[#allocation6 + $0x64] sm:$0xf]
    %v173 = vld [vmem:[#allocation6 + $0x68] sm:$0xf]
    %v174 = vld [vmem:[#allocation6 + $0x6c] sm:$0xf]
    %v175 = vld [vmem:[#allocation6 + $0x70] sm:$0xf]
    %v176 = vld [vmem:[#allocation6 + $0x74] sm:$0xf]
    %v177 = vld [vmem:[#allocation6 + $0x78] sm:$0xf]
    %v178 = vld [vmem:[#allocation6 + $0x7c] sm:$0xf]
    %v179 = vld [vmem:[#allocation6 + $0x80] sm:$0xf]
    %v180 = vld [vmem:[#allocation6 + $0x84] sm:$0xf]
    %v181 = vld [vmem:[#allocation6 + $0x88] sm:$0xf]
    %v182 = vld [vmem:[#allocation6 + $0x8c] sm:$0xf]
    %v183 = vld [vmem:[#allocation6 + $0x90] sm:$0xf]
    %v184 = vld [vmem:[#allocation6 + $0x94] sm:$0xf]
    %v185 = vld [vmem:[#allocation6 + $0x98] sm:$0xf]
    %v186 = vld [vmem:[#allocation6 + $0x9c] sm:$0xf]
    %v187 = vld [vmem:[#allocation6 + $0xa0] sm:$0xf]
    %v188 = vld [vmem:[#allocation6 + $0xa4] sm:$0xf]
    %v189 = vld [vmem:[#allocation6 + $0xa8] sm:$0xf]
    %v190 = vld [vmem:[#allocation6 + $0xac] sm:$0xf]
    %v191 = vld [vmem:[#allocation6 + $0xb0] sm:$0xf]
    %v192 = vld [vmem:[#allocation6 + $0xb4] sm:$0xf]
    %v193 = vld [vmem:[#allocation6 + $0xb8] sm:$0xf]
    %v194 = vld [vmem:[#allocation6 + $0xbc] sm:$0xf]
    %v195 = vld [vmem:[#allocation6 + $0xc0] sm:$0xf]
    %v196 = vld [vmem:[#allocation6 + $0xc4] sm:$0xf]
    %v197 = vld [vmem:[#allocation6 + $0xc8] sm:$0xf]
    %v198 = vld [vmem:[#allocation6 + $0xcc] sm:$0xf]
    %v199 = vld [vmem:[#allocation6 + $0xd0] sm:$0xf]
    %v200 = vld [vmem:[#allocation6 + $0xd4] sm:$0xf]
    %v201 = vld [vmem:[#allocation6 + $0xd8] sm:$0xf]
    %v202 = vld [vmem:[#allocation6 + $0xdc] sm:$0xf]
    %v203 = vld [vmem:[#allocation6 + $0xe0] sm:$0xf]
    %v204 = vld [vmem:[#allocation6 + $0xe4] sm:$0xf]
    %v205 = vld [vmem:[#allocation6 + $0xe8] sm:$0xf]
    %v206 = vld [vmem:[#allocation6 + $0xec] sm:$0xf]
    %v207 = vld [vmem:[#allocation6 + $0xf0] sm:$0xf]
    %v208 = vld [vmem:[#allocation6 + $0xf4] sm:$0xf]
    %v209 = vld [vmem:[#allocation6 + $0xf8] sm:$0xf]
    %v210 = vld [vmem:[#allocation6 + $0xfc] sm:$0xf]
    %v211 = vld [vmem:[#allocation6 + $0x100] sm:$0xf]
    %v212 = vld [vmem:[#allocation6 + $0x104] sm:$0xf]
    %v213 = vld [vmem:[#allocation6 + $0x108] sm:$0xf]
    %v214 = vld [vmem:[#allocation6 + $0x10c] sm:$0xf]
    %v215 = vld [vmem:[#allocation6 + $0x110] sm:$0xf]
    %v216 = vld [vmem:[#allocation6 + $0x114] sm:$0xf]
    %v217 = vld [vmem:[#allocation6 + $0x118] sm:$0xf]
    %v218 = vld [vmem:[#allocation6 + $0x11c] sm:$0xf]
    %v219 = vld [vmem:[#allocation6 + $0x120] sm:$0xf]
    %v220 = vld [vmem:[#allocation6 + $0x124] sm:$0xf]
    %v221 = vld [vmem:[#allocation6 + $0x128] sm:$0xf]
    %v222 = vld [vmem:[#allocation6 + $0x12c] sm:$0xf]
    %v223 = vld [vmem:[#allocation6 + $0x130] sm:$0xf]
    %v224 = vld [vmem:[#allocation6 + $0x134] sm:$0xf]
    %v225 = vld [vmem:[#allocation6 + $0x138] sm:$0xf]
    %v226 = vld [vmem:[#allocation6 + $0x13c] sm:$0xf]
    %v227 = vld [vmem:[#allocation6 + $0x140] sm:$0xf]
    %v228 = vld [vmem:[#allocation6 + $0x144] sm:$0xf]
    %v229 = vld [vmem:[#allocation6 + $0x148] sm:$0xf]
    %v230 = vld [vmem:[#allocation6 + $0x14c] sm:$0xf]
    %v231 = vld [vmem:[#allocation6 + $0x150] sm:$0xf]
    %v232 = vld [vmem:[#allocation6 + $0x154] sm:$0xf]
    %v233 = vld [vmem:[#allocation6 + $0x158] sm:$0xf]
    %v234 = vld [vmem:[#allocation6 + $0x15c] sm:$0xf]
    %v235 = vld [vmem:[#allocation6 + $0x160] sm:$0xf]
    %v236 = vld [vmem:[#allocation6 + $0x164] sm:$0xf]
    %v237 = vld [vmem:[#allocation6 + $0x168] sm:$0xf]
    %v238 = vld [vmem:[#allocation6 + $0x16c] sm:$0xf]
    %v239 = vld [vmem:[#allocation6 + $0x170] sm:$0xf]
    %v240 = vld [vmem:[#allocation6 + $0x174] sm:$0xf]
    %v241 = vld [vmem:[#allocation6 + $0x178] sm:$0xf]
    %v242 = vld [vmem:[#allocation6 + $0x17c] sm:$0xf]
    %v243 = vld [vmem:[#allocation6 + $0x180] sm:$0xf]
    %v244 = vld [vmem:[#allocation6 + $0x184] sm:$0xf]
    %v245 = vld [vmem:[#allocation6 + $0x188] sm:$0xf]
    %v246 = vld [vmem:[#allocation6 + $0x18c] sm:$0xf]
    %v247 = vld [vmem:[#allocation6 + $0x190] sm:$0xf]
    %v248 = vld [vmem:[#allocation6 + $0x194] sm:$0xf]
    %v249 = vld [vmem:[#allocation6 + $0x198] sm:$0xf]
    %v250 = vld [vmem:[#allocation6 + $0x19c] sm:$0xf]
    %v251 = vld [vmem:[#allocation6 + $0x1a0] sm:$0xf]
    %v252 = vld [vmem:[#allocation6 + $0x1a4] sm:$0xf]
    %v253 = vld [vmem:[#allocation6 + $0x1a8] sm:$0xf]
    %v254 = vld [vmem:[#allocation6 + $0x1ac] sm:$0xf]
    %v255 = vld [vmem:[#allocation6 + $0x1b0] sm:$0xf]
    %v256 = vld [vmem:[#allocation6 + $0x1b4] sm:$0xf]
    %v257 = vld [vmem:[#allocation6 + $0x1b8] sm:$0xf]
    %v258 = vld [vmem:[#allocation6 + $0x1bc] sm:$0xf]
    %v259 = vld [vmem:[%s2] sm:$0x1]
    %v261 = vlaneseq
    %v262 = vshrl.u32 %v261, 7
    %v263 = vsub.s32 0, %v262
    %v264 = vrot.slane %v259, %v263
    %v270 = vunpack.c.l.b16 %v143
    %v271 = vunpack.c.h.b16 %v143
    %v272 = vunpack.c.l.b16 %v144
    %v273 = vunpack.c.h.b16 %v144
    %v274 = vunpack.c.l.b16 %v145
    %v275 = vunpack.c.h.b16 %v145
    %v276 = vunpack.c.l.b16 %v146
    %v277 = vpack.c.b16 %v270, %v270
    %v278 = vpack.c.b16 %v271, %v271
    %v279 = vpack.c.b16 %v272, %v272
    %v280 = vpack.c.b16 %v273, %v273
    %v281 = vpack.c.b16 %v274, %v274
    %v282 = vpack.c.b16 %v275, %v275
    %v283 = vpack.c.b16 %v276, %v276
    %v403 = vunpack.c.l.b16 %v147
    %v404 = vunpack.c.l.b16 %v148
    %v405 = vunpack.c.l.b16 %v149
    %v406 = vunpack.c.l.b16 %v150
    %v407 = vunpack.c.l.b16 %v151
    %v408 = vunpack.c.l.b16 %v152
    %v409 = vunpack.c.l.b16 %v153
    %v410 = vunpack.c.l.b16 %v154
    %v411 = vunpack.c.l.b16 %v155
    %v412 = vunpack.c.l.b16 %v156
    %v413 = vunpack.c.l.b16 %v157
    %v414 = vunpack.c.l.b16 %v158
    %v415 = vunpack.c.l.b16 %v159
    %v416 = vunpack.c.l.b16 %v160
    %v417 = vunpack.c.l.b16 %v161
    %v418 = vunpack.c.l.b16 %v162
    %v419 = vunpack.c.l.b16 %v163
    %v420 = vunpack.c.l.b16 %v164
    %v421 = vunpack.c.l.b16 %v165
    %v422 = vunpack.c.l.b16 %v166
    %v423 = vunpack.c.l.b16 %v167
    %v424 = vunpack.c.l.b16 %v168
    %v425 = vunpack.c.l.b16 %v169
    %v426 = vunpack.c.l.b16 %v170
    %v427 = vunpack.c.l.b16 %v171
    %v428 = vunpack.c.l.b16 %v172
    %v429 = vunpack.c.l.b16 %v173
    %v430 = vunpack.c.l.b16 %v174
    %v431 = vunpack.c.l.b16 %v175
    %v432 = vunpack.c.l.b16 %v176
    %v433 = vunpack.c.l.b16 %v177
    %v434 = vunpack.c.l.b16 %v178
    %v435 = vunpack.c.l.b16 %v179
    %v436 = vunpack.c.l.b16 %v180
    %v437 = vunpack.c.l.b16 %v181
    %v438 = vunpack.c.l.b16 %v182
    %v439 = vunpack.c.l.b16 %v183
    %v440 = vunpack.c.l.b16 %v184
    %v441 = vunpack.c.l.b16 %v185
    %v442 = vunpack.c.l.b16 %v186
    %v443 = vunpack.c.l.b16 %v187
    %v444 = vunpack.c.l.b16 %v188
    %v445 = vunpack.c.l.b16 %v189
    %v446 = vunpack.c.l.b16 %v190
    %v447 = vunpack.c.l.b16 %v191
    %v448 = vunpack.c.l.b16 %v192
    %v449 = vunpack.c.l.b16 %v193
    %v450 = vunpack.c.l.b16 %v194
    %v451 = vunpack.c.l.b16 %v195
    %v452 = vunpack.c.l.b16 %v196
    %v453 = vunpack.c.l.b16 %v197
    %v454 = vunpack.c.l.b16 %v198
    %v455 = vunpack.c.l.b16 %v199
    %v456 = vunpack.c.l.b16 %v200
    %v457 = vunpack.c.l.b16 %v201
    %v458 = vunpack.c.l.b16 %v202
    %v459 = vunpack.c.l.b16 %v203
    %v460 = vunpack.c.l.b16 %v204
    %v461 = vunpack.c.l.b16 %v205
    %v462 = vunpack.c.l.b16 %v206
    %v463 = vunpack.c.l.b16 %v207
    %v464 = vunpack.c.l.b16 %v208
    %v465 = vunpack.c.l.b16 %v209
    %v466 = vunpack.c.l.b16 %v210
    %v467 = vunpack.c.l.b16 %v211
    %v468 = vunpack.c.l.b16 %v212
    %v469 = vunpack.c.l.b16 %v213
    %v470 = vunpack.c.l.b16 %v214
    %v471 = vunpack.c.l.b16 %v215
    %v472 = vunpack.c.l.b16 %v216
    %v473 = vunpack.c.l.b16 %v217
    %v474 = vunpack.c.l.b16 %v218
    %v475 = vunpack.c.l.b16 %v219
    %v476 = vunpack.c.l.b16 %v220
    %v477 = vunpack.c.l.b16 %v221
    %v478 = vunpack.c.l.b16 %v222
    %v479 = vunpack.c.l.b16 %v223
    %v480 = vunpack.c.l.b16 %v224
    %v481 = vunpack.c.l.b16 %v225
    %v482 = vunpack.c.l.b16 %v226
    %v483 = vunpack.c.l.b16 %v227
    %v484 = vunpack.c.l.b16 %v228
    %v485 = vunpack.c.l.b16 %v229
    %v486 = vunpack.c.l.b16 %v230
    %v487 = vunpack.c.l.b16 %v231
    %v488 = vunpack.c.l.b16 %v232
    %v489 = vunpack.c.l.b16 %v233
    %v490 = vunpack.c.l.b16 %v234
    %v491 = vunpack.c.l.b16 %v235
    %v492 = vunpack.c.l.b16 %v236
    %v493 = vunpack.c.l.b16 %v237
    %v494 = vunpack.c.l.b16 %v238
    %v495 = vunpack.c.l.b16 %v239
    %v496 = vunpack.c.l.b16 %v240
    %v497 = vunpack.c.l.b16 %v241
    %v498 = vunpack.c.l.b16 %v242
    %v499 = vunpack.c.l.b16 %v243
    %v500 = vunpack.c.l.b16 %v244
    %v501 = vunpack.c.l.b16 %v245
    %v502 = vunpack.c.l.b16 %v246
    %v503 = vunpack.c.l.b16 %v247
    %v504 = vunpack.c.l.b16 %v248
    %v505 = vunpack.c.l.b16 %v249
    %v506 = vunpack.c.l.b16 %v250
    %v507 = vunpack.c.l.b16 %v251
    %v508 = vunpack.c.l.b16 %v252
    %v509 = vunpack.c.l.b16 %v253
    %v510 = vunpack.c.l.b16 %v254
    %v511 = vunpack.c.l.b16 %v255
    %v512 = vunpack.c.l.b16 %v256
    %v513 = vunpack.c.l.b16 %v257
    %v514 = vunpack.c.l.b16 %v258
    %v515 = vpack.c.b16 %v404, %v403
    %v516 = vpack.c.b16 %v406, %v405
    %v517 = vpack.c.b16 %v408, %v407
    %v518 = vpack.c.b16 %v410, %v409
    %v519 = vpack.c.b16 %v412, %v411
    %v520 = vpack.c.b16 %v414, %v413
    %v521 = vpack.c.b16 %v416, %v415
    %v522 = vpack.c.b16 %v418, %v417
    %v523 = vpack.c.b16 %v420, %v419
    %v524 = vpack.c.b16 %v422, %v421
    %v525 = vpack.c.b16 %v424, %v423
    %v526 = vpack.c.b16 %v426, %v425
    %v527 = vpack.c.b16 %v428, %v427
    %v528 = vpack.c.b16 %v430, %v429
    %v529 = vpack.c.b16 %v432, %v431
    %v530 = vpack.c.b16 %v434, %v433
    %v531 = vpack.c.b16 %v436, %v435
    %v532 = vpack.c.b16 %v438, %v437
    %v533 = vpack.c.b16 %v440, %v439
    %v534 = vpack.c.b16 %v442, %v441
    %v535 = vpack.c.b16 %v444, %v443
    %v536 = vpack.c.b16 %v446, %v445
    %v537 = vpack.c.b16 %v448, %v447
    %v538 = vpack.c.b16 %v450, %v449
    %v539 = vpack.c.b16 %v452, %v451
    %v540 = vpack.c.b16 %v454, %v453
    %v541 = vpack.c.b16 %v456, %v455
    %v542 = vpack.c.b16 %v458, %v457
    %v543 = vpack.c.b16 %v460, %v459
    %v544 = vpack.c.b16 %v462, %v461
    %v545 = vpack.c.b16 %v464, %v463
    %v546 = vpack.c.b16 %v466, %v465
    %v547 = vpack.c.b16 %v468, %v467
    %v548 = vpack.c.b16 %v470, %v469
    %v549 = vpack.c.b16 %v472, %v471
    %v550 = vpack.c.b16 %v474, %v473
    %v551 = vpack.c.b16 %v476, %v475
    %v552 = vpack.c.b16 %v478, %v477
    %v553 = vpack.c.b16 %v480, %v479
    %v554 = vpack.c.b16 %v482, %v481
    %v555 = vpack.c.b16 %v484, %v483
    %v556 = vpack.c.b16 %v486, %v485
    %v557 = vpack.c.b16 %v488, %v487
    %v558 = vpack.c.b16 %v490, %v489
    %v559 = vpack.c.b16 %v492, %v491
    %v560 = vpack.c.b16 %v494, %v493
    %v561 = vpack.c.b16 %v496, %v495
    %v562 = vpack.c.b16 %v498, %v497
    %v563 = vpack.c.b16 %v500, %v499
    %v564 = vpack.c.b16 %v502, %v501
    %v565 = vpack.c.b16 %v504, %v503
    %v566 = vpack.c.b16 %v506, %v505
    %v567 = vpack.c.b16 %v508, %v507
    %v568 = vpack.c.b16 %v510, %v509
    %v569 = vpack.c.b16 %v512, %v511
    %v570 = vpack.c.b16 %v514, %v513
    %627 = vmatprep.subr.bf16.mxu0 0
    %628 = vmatpush1.bf16.msra.mxu0 %v522
    %629 = vmatprep.subr.bf16.mxu0 0
    %630 = vmatpush1.bf16.msra.mxu0 %v521
    %631 = vmatprep.subr.bf16.mxu0 0
    %632 = vmatpush1.bf16.msra.mxu0 %v520
    %633 = vmatprep.subr.bf16.mxu0 0
    %634 = vmatpush1.bf16.msra.mxu0 %v519
    %635 = vmatprep.subr.bf16.mxu0 0
    %636 = vmatpush1.bf16.msra.mxu0 %v518
    %637 = vmatprep.subr.bf16.mxu0 0
    %638 = vmatpush1.bf16.msra.mxu0 %v517
    %639 = vmatprep.subr.bf16.mxu0 0
    %640 = vmatpush1.bf16.msra.mxu0 %v516
    %641 = vmatprep.subr.bf16.mxu0 0
    %642 = vmatpush1.bf16.msra.mxu0 %v515
    %643 = vmatprep.subr.bf16.mxu0 0
    %644 = vmatpush2.bf16.msra.mxu0 %v530
    %645 = vmatprep.subr.bf16.mxu0 0
    %646 = vmatpush2.bf16.msra.mxu0 %v529
    %647 = vmatprep.subr.bf16.mxu0 0
    %648 = vmatpush2.bf16.msra.mxu0 %v528
    %649 = vmatprep.subr.bf16.mxu0 0
    %650 = vmatpush2.bf16.msra.mxu0 %v527
    %651 = vmatprep.subr.bf16.mxu0 0
    %652 = vmatpush2.bf16.msra.mxu0 %v526
    %653 = vmatprep.subr.bf16.mxu0 0
    %654 = vmatpush2.bf16.msra.mxu0 %v525
    %655 = vmatprep.subr.bf16.mxu0 0
    %656 = vmatpush2.bf16.msra.mxu0 %v524
    %657 = vmatprep.subr.bf16.mxu0 0
    %658 = vmatpush2.bf16.msra.mxu0 %v523
    %659 = vmatprep.mubr.bf16.mxu0 %v278
    %660 = vmatmul.mubr.bf16.gmra.mxu0 %v277
    %v661 = vpop.f32.mrf.mxu0
    %v662 = vadd.f32 %v264, %v661
    %v663 = vpop.f32.mrf.mxu0
    %v664 = vpop.f32.mrf.mxu0
    %v665 = vpop.f32.mrf.mxu0
    %666 = vdwg.mxu0
    %667 = vmatprep.subr.bf16.mxu0 0
    %668 = vmatpush1.bf16.msra.mxu0 %v538
    %669 = vmatprep.subr.bf16.mxu0 0
    %670 = vmatpush1.bf16.msra.mxu0 %v537
    %671 = vmatprep.subr.bf16.mxu0 0
    %672 = vmatpush1.bf16.msra.mxu0 %v536
    %673 = vmatprep.subr.bf16.mxu0 0
    %674 = vmatpush1.bf16.msra.mxu0 %v535
    %675 = vmatprep.subr.bf16.mxu0 0
    %676 = vmatpush1.bf16.msra.mxu0 %v534
    %677 = vmatprep.subr.bf16.mxu0 0
    %678 = vmatpush1.bf16.msra.mxu0 %v533
    %679 = vmatprep.subr.bf16.mxu0 0
    %680 = vmatpush1.bf16.msra.mxu0 %v532
    %681 = vmatprep.subr.bf16.mxu0 0
    %682 = vmatpush1.bf16.msra.mxu0 %v531
    %683 = vmatprep.subr.bf16.mxu0 0
    %684 = vmatpush2.bf16.msra.mxu0 %v546
    %685 = vmatprep.subr.bf16.mxu0 0
    %686 = vmatpush2.bf16.msra.mxu0 %v545
    %687 = vmatprep.subr.bf16.mxu0 0
    %688 = vmatpush2.bf16.msra.mxu0 %v544
    %689 = vmatprep.subr.bf16.mxu0 0
    %690 = vmatpush2.bf16.msra.mxu0 %v543
    %691 = vmatprep.subr.bf16.mxu0 0
    %692 = vmatpush2.bf16.msra.mxu0 %v542
    %693 = vmatprep.subr.bf16.mxu0 0
    %694 = vmatpush2.bf16.msra.mxu0 %v541
    %695 = vmatprep.subr.bf16.mxu0 0
    %696 = vmatpush2.bf16.msra.mxu0 %v540
    %697 = vmatprep.subr.bf16.mxu0 0
    %698 = vmatpush2.bf16.msra.mxu0 %v539
    %699 = vmatprep.mubr.bf16.mxu0 %v280
    %700 = vmatmul.mubr.bf16.gmra.mxu0 %v279
    %v701 = vpop.f32.mrf.mxu0
    %v702 = vadd.f32 %v662, %v701
    %v703 = vpop.f32.mrf.mxu0
    %v704 = vpop.f32.mrf.mxu0
    %v705 = vpop.f32.mrf.mxu0
    %706 = vdwg.mxu0
    %707 = vmatprep.subr.bf16.mxu0 0
    %708 = vmatpush1.bf16.msra.mxu0 %v554
    %709 = vmatprep.subr.bf16.mxu0 0
    %710 = vmatpush1.bf16.msra.mxu0 %v553
    %711 = vmatprep.subr.bf16.mxu0 0
    %712 = vmatpush1.bf16.msra.mxu0 %v552
    %713 = vmatprep.subr.bf16.mxu0 0
    %714 = vmatpush1.bf16.msra.mxu0 %v551
    %715 = vmatprep.subr.bf16.mxu0 0
    %716 = vmatpush1.bf16.msra.mxu0 %v550
    %717 = vmatprep.subr.bf16.mxu0 0
    %718 = vmatpush1.bf16.msra.mxu0 %v549
    %719 = vmatprep.subr.bf16.mxu0 0
    %720 = vmatpush1.bf16.msra.mxu0 %v548
    %721 = vmatprep.subr.bf16.mxu0 0
    %722 = vmatpush1.bf16.msra.mxu0 %v547
    %723 = vmatprep.subr.bf16.mxu0 0
    %724 = vmatpush2.bf16.msra.mxu0 %v562
    %725 = vmatprep.subr.bf16.mxu0 0
    %726 = vmatpush2.bf16.msra.mxu0 %v561
    %727 = vmatprep.subr.bf16.mxu0 0
    %728 = vmatpush2.bf16.msra.mxu0 %v560
    %729 = vmatprep.subr.bf16.mxu0 0
    %730 = vmatpush2.bf16.msra.mxu0 %v559
    %731 = vmatprep.subr.bf16.mxu0 0
    %732 = vmatpush2.bf16.msra.mxu0 %v558
    %733 = vmatprep.subr.bf16.mxu0 0
    %734 = vmatpush2.bf16.msra.mxu0 %v557
    %735 = vmatprep.subr.bf16.mxu0 0
    %736 = vmatpush2.bf16.msra.mxu0 %v556
    %737 = vmatprep.subr.bf16.mxu0 0
    %738 = vmatpush2.bf16.msra.mxu0 %v555
    %739 = vmatprep.mubr.bf16.mxu0 %v282
    %740 = vmatmul.mubr.bf16.gmra.mxu0 %v281
    %v741 = vpop.f32.mrf.mxu0
    %v742 = vadd.f32 %v702, %v741
    %v743 = vpop.f32.mrf.mxu0
    %v744 = vpop.f32.mrf.mxu0
    %v745 = vpop.f32.mrf.mxu0
    %746 = vdwg.mxu0
    %747 = vmatprep.subr.bf16.mxu0 0
    %748 = vmatpush1.bf16.msra.mxu0 %v570
    %749 = vmatprep.subr.bf16.mxu0 0
    %750 = vmatpush1.bf16.msra.mxu0 %v569
    %751 = vmatprep.subr.bf16.mxu0 0
    %752 = vmatpush1.bf16.msra.mxu0 %v568
    %753 = vmatprep.subr.bf16.mxu0 0
    %754 = vmatpush1.bf16.msra.mxu0 %v567
    %755 = vmatprep.subr.bf16.mxu0 0
    %756 = vmatpush1.bf16.msra.mxu0 %v566
    %757 = vmatprep.subr.bf16.mxu0 0
    %758 = vmatpush1.bf16.msra.mxu0 %v565
    %759 = vmatprep.subr.bf16.mxu0 0
    %760 = vmatpush1.bf16.msra.mxu0 %v564
    %761 = vmatprep.subr.bf16.mxu0 0
    %762 = vmatpush1.bf16.msra.mxu0 %v563
    %763 = vmatprep.subr.bf16.mxu0 0
    %764 = vmatpush2.bf16.msra.mxu0 0
    %765 = vmatprep.subr.bf16.mxu0 0
    %766 = vmatpush2.bf16.msra.mxu0 0
    %767 = vmatprep.subr.bf16.mxu0 0
    %768 = vmatpush2.bf16.msra.mxu0 0
    %769 = vmatprep.subr.bf16.mxu0 0
    %770 = vmatpush2.bf16.msra.mxu0 0
    %771 = vmatprep.subr.bf16.mxu0 0
    %772 = vmatpush2.bf16.msra.mxu0 0
    %773 = vmatprep.subr.bf16.mxu0 0
    %774 = vmatpush2.bf16.msra.mxu0 0
    %775 = vmatprep.subr.bf16.mxu0 0
    %776 = vmatpush2.bf16.msra.mxu0 0
    %777 = vmatprep.subr.bf16.mxu0 0
    %778 = vmatpush2.bf16.msra.mxu0 0
    %779 = vmatprep.mubr.bf16.mxu0 0
    %780 = vmatmul.mubr.bf16.gmra.mxu0 %v283
    %v781 = vpop.f32.mrf.mxu0
    %v782 = vadd.f32 %v742, %v781
    %v783 = vpop.f32.mrf.mxu0
    %v784 = vpop.f32.mrf.mxu0
    %v785 = vpop.f32.mrf.mxu0
    %786 = vdwg.mxu0
    %v787 = vmax.f32 %v782, 0.0
    %v788 = vpack.c.bf16 %v787, %v787
    %v789 = vld [vmem:[#allocation8] sm:$0xf]
    %v790 = vld [vmem:[#allocation8 + $0x4] sm:$0xf]
    %v791 = vld [vmem:[#allocation8 + $0x8] sm:$0xf]
    %v792 = vld [vmem:[#allocation8 + $0xc] sm:$0xf]
    %v793 = vld [vmem:[#allocation8 + $0x10] sm:$0xf]
    %v794 = vld [vmem:[#allocation8 + $0x14] sm:$0xf]
    %v795 = vld [vmem:[#allocation8 + $0x18] sm:$0xf]
    %v796 = vld [vmem:[#allocation8 + $0x1c] sm:$0xf]
    %v797 = vld [vmem:[#allocation8 + $0x20] sm:$0xf]
    %v798 = vld [vmem:[#allocation8 + $0x24] sm:$0xf]
    %v799 = vld [vmem:[#allocation8 + $0x28] sm:$0xf]
    %v800 = vld [vmem:[#allocation8 + $0x2c] sm:$0xf]
    %v801 = vld [vmem:[#allocation8 + $0x30] sm:$0xf]
    %v802 = vld [vmem:[#allocation8 + $0x34] sm:$0xf]
    %v803 = vld [vmem:[#allocation8 + $0x38] sm:$0xf]
    %v804 = vld [vmem:[#allocation8 + $0x3c] sm:$0xf]
    %v805 = vld [vmem:[%s4] sm:$0x1]
    %v807 = vlaneseq
    %v808 = vshrl.u32 %v807, 7
    %v809 = vsub.s32 0, %v808
    %v810 = vrot.slane %v805, %v809
    %v828 = vunpack.c.l.b16 %v789
    %v829 = vunpack.c.l.b16 %v790
    %v830 = vunpack.c.l.b16 %v791
    %v831 = vunpack.c.l.b16 %v792
    %v832 = vunpack.c.l.b16 %v793
    %v833 = vunpack.c.l.b16 %v794
    %v834 = vunpack.c.l.b16 %v795
    %v835 = vunpack.c.l.b16 %v796
    %v836 = vunpack.c.l.b16 %v797
    %v837 = vunpack.c.l.b16 %v798
    %v838 = vunpack.c.l.b16 %v799
    %v839 = vunpack.c.l.b16 %v800
    %v840 = vunpack.c.l.b16 %v801
    %v841 = vunpack.c.l.b16 %v802
    %v842 = vunpack.c.l.b16 %v803
    %v843 = vunpack.c.l.b16 %v804
    %v844 = vpack.c.b16 %v829, %v828
    %v845 = vpack.c.b16 %v831, %v830
    %v846 = vpack.c.b16 %v833, %v832
    %v847 = vpack.c.b16 %v835, %v834
    %v848 = vpack.c.b16 %v837, %v836
    %v849 = vpack.c.b16 %v839, %v838
    %v850 = vpack.c.b16 %v841, %v840
    %v851 = vpack.c.b16 %v843, %v842
    %860 = vmatprep.subr.bf16.mxu0 0
    %861 = vmatpush1.bf16.msra.mxu0 %v851
    %862 = vmatprep.subr.bf16.mxu0 0
    %863 = vmatpush1.bf16.msra.mxu0 %v850
    %864 = vmatprep.subr.bf16.mxu0 0
    %865 = vmatpush1.bf16.msra.mxu0 %v849
    %866 = vmatprep.subr.bf16.mxu0 0
    %867 = vmatpush1.bf16.msra.mxu0 %v848
    %868 = vmatprep.subr.bf16.mxu0 0
    %869 = vmatpush1.bf16.msra.mxu0 %v847
    %870 = vmatprep.subr.bf16.mxu0 0
    %871 = vmatpush1.bf16.msra.mxu0 %v846
    %872 = vmatprep.subr.bf16.mxu0 0
    %873 = vmatpush1.bf16.msra.mxu0 %v845
    %874 = vmatprep.subr.bf16.mxu0 0
    %875 = vmatpush1.bf16.msra.mxu0 %v844
    %876 = vmatprep.subr.bf16.mxu0 0
    %877 = vmatpush2.bf16.msra.mxu0 0
    %878 = vmatprep.subr.bf16.mxu0 0
    %879 = vmatpush2.bf16.msra.mxu0 0
    %880 = vmatprep.subr.bf16.mxu0 0
    %881 = vmatpush2.bf16.msra.mxu0 0
    %882 = vmatprep.subr.bf16.mxu0 0
    %883 = vmatpush2.bf16.msra.mxu0 0
    %884 = vmatprep.subr.bf16.mxu0 0
    %885 = vmatpush2.bf16.msra.mxu0 0
    %886 = vmatprep.subr.bf16.mxu0 0
    %887 = vmatpush2.bf16.msra.mxu0 0
    %888 = vmatprep.subr.bf16.mxu0 0
    %889 = vmatpush2.bf16.msra.mxu0 0
    %890 = vmatprep.subr.bf16.mxu0 0
    %891 = vmatpush2.bf16.msra.mxu0 0
    %892 = vmatprep.mubr.bf16.mxu0 0
    %893 = vmatmul.mubr.bf16.gmra.mxu0 %v788
    %v894 = vpop.f32.mrf.mxu0
    %v895 = vadd.f32 %v810, %v894
    %v896 = vpop.f32.mrf.mxu0
    %v897 = vpop.f32.mrf.mxu0
    %v898 = vpop.f32.mrf.mxu0
    %899 = vdwg.mxu0
    %v900 = vmax.f32 %v895, 0.0
    %v901 = vpack.c.bf16 %v900, %v900
    %v902 = vld [vmem:[#allocation9] sm:$0xf]
    %v903 = vld [vmem:[#allocation9 + $0x4] sm:$0xf]
    %v904 = vld [vmem:[#allocation9 + $0x8] sm:$0xf]
    %v905 = vld [vmem:[#allocation9 + $0xc] sm:$0xf]
    %v906 = vld [vmem:[#allocation9 + $0x10] sm:$0xf]
    %v907 = vld [vmem:[#allocation9 + $0x14] sm:$0xf]
    %v908 = vld [vmem:[#allocation9 + $0x18] sm:$0xf]
    %v909 = vld [vmem:[#allocation9 + $0x1c] sm:$0xf]
    %v910 = vld [vmem:[#allocation9 + $0x20] sm:$0xf]
    %v911 = vld [vmem:[#allocation9 + $0x24] sm:$0xf]
    %v912 = vld [vmem:[#allocation9 + $0x28] sm:$0xf]
    %v913 = vld [vmem:[#allocation9 + $0x2c] sm:$0xf]
    %v914 = vld [vmem:[#allocation9 + $0x30] sm:$0xf]
    %v915 = vld [vmem:[#allocation9 + $0x34] sm:$0xf]
    %v916 = vld [vmem:[#allocation9 + $0x38] sm:$0xf]
    %v917 = vld [vmem:[#allocation9 + $0x3c] sm:$0xf]
    %v918 = vld [vmem:[%s6] sm:$0x1]
    %v920 = vlaneseq
    %v921 = vshrl.u32 %v920, 7
    %v922 = vsub.s32 0, %v921
    %v923 = vrot.slane %v918, %v922
    %v941 = vunpack.c.l.b16 %v902
    %v942 = vunpack.c.l.b16 %v903
    %v943 = vunpack.c.l.b16 %v904
    %v944 = vunpack.c.l.b16 %v905
    %v945 = vunpack.c.l.b16 %v906
    %v946 = vunpack.c.l.b16 %v907
    %v947 = vunpack.c.l.b16 %v908
    %v948 = vunpack.c.l.b16 %v909
    %v949 = vunpack.c.l.b16 %v910
    %v950 = vunpack.c.l.b16 %v911
    %v951 = vunpack.c.l.b16 %v912
    %v952 = vunpack.c.l.b16 %v913
    %v953 = vunpack.c.l.b16 %v914
    %v954 = vunpack.c.l.b16 %v915
    %v955 = vunpack.c.l.b16 %v916
    %v956 = vunpack.c.l.b16 %v917
    %v957 = vpack.c.b16 %v942, %v941
    %v958 = vpack.c.b16 %v944, %v943
    %v959 = vpack.c.b16 %v946, %v945
    %v960 = vpack.c.b16 %v948, %v947
    %v961 = vpack.c.b16 %v950, %v949
    %v962 = vpack.c.b16 %v952, %v951
    %v963 = vpack.c.b16 %v954, %v953
    %v964 = vpack.c.b16 %v956, %v955
    %973 = vmatprep.subr.bf16.mxu0 0
    %974 = vmatpush1.bf16.msra.mxu0 %v964
    %975 = vmatprep.subr.bf16.mxu0 0
    %976 = vmatpush1.bf16.msra.mxu0 %v963
    %977 = vmatprep.subr.bf16.mxu0 0
    %978 = vmatpush1.bf16.msra.mxu0 %v962
    %979 = vmatprep.subr.bf16.mxu0 0
    %980 = vmatpush1.bf16.msra.mxu0 %v961
    %981 = vmatprep.subr.bf16.mxu0 0
    %982 = vmatpush1.bf16.msra.mxu0 %v960
    %983 = vmatprep.subr.bf16.mxu0 0
    %984 = vmatpush1.bf16.msra.mxu0 %v959
    %985 = vmatprep.subr.bf16.mxu0 0
    %986 = vmatpush1.bf16.msra.mxu0 %v958
    %987 = vmatprep.subr.bf16.mxu0 0
    %988 = vmatpush1.bf16.msra.mxu0 %v957
    %989 = vmatprep.subr.bf16.mxu0 0
    %990 = vmatpush2.bf16.msra.mxu0 0
    %991 = vmatprep.subr.bf16.mxu0 0
    %992 = vmatpush2.bf16.msra.mxu0 0
    %993 = vmatprep.subr.bf16.mxu0 0
    %994 = vmatpush2.bf16.msra.mxu0 0
    %995 = vmatprep.subr.bf16.mxu0 0
    %996 = vmatpush2.bf16.msra.mxu0 0
    %997 = vmatprep.subr.bf16.mxu0 0
    %998 = vmatpush2.bf16.msra.mxu0 0
    %999 = vmatprep.subr.bf16.mxu0 0
    %1000 = vmatpush2.bf16.msra.mxu0 0
    %1001 = vmatprep.subr.bf16.mxu0 0
    %1002 = vmatpush2.bf16.msra.mxu0 0
    %1003 = vmatprep.subr.bf16.mxu0 0
    %1004 = vmatpush2.bf16.msra.mxu0 0
    %1005 = vmatprep.mubr.bf16.mxu0 0
    %1006 = vmatmul.mubr.bf16.gmra.mxu0 %v901
    %v1007 = vpop.f32.mrf.mxu0
    %v1008 = vadd.f32 %v923, %v1007
    %v1009 = vpop.f32.mrf.mxu0
    %v1010 = vpop.f32.mrf.mxu0
    %v1011 = vpop.f32.mrf.mxu0
    %1012 = vdwg.mxu0
    %v1013 = vmax.f32 %v1008, 0.0
    %v1014 = vpack.c.bf16 %v1013, %v1013
    %v1015 = vld [vmem:[#allocation11] sm:$0xf]
    %v1016 = vld [vmem:[#allocation11 + $0x4] sm:$0xf]
    %v1017 = vld [vmem:[#allocation11 + $0x8] sm:$0xf]
    %v1018 = vld [vmem:[#allocation11 + $0xc] sm:$0xf]
    %v1019 = vld [vmem:[#allocation11 + $0x10] sm:$0xf]
    %v1020 = vld [vmem:[#allocation11 + $0x14] sm:$0xf]
    %v1021 = vld [vmem:[#allocation11 + $0x18] sm:$0xf]
    %v1022 = vld [vmem:[#allocation11 + $0x1c] sm:$0xf]
    %v1023 = vld [vmem:[#allocation11 + $0x20] sm:$0xf]
    %v1024 = vld [vmem:[#allocation11 + $0x24] sm:$0xf]
    %v1025 = vld [vmem:[#allocation11 + $0x28] sm:$0xf]
    %v1026 = vld [vmem:[#allocation11 + $0x2c] sm:$0xf]
    %v1027 = vld [vmem:[#allocation11 + $0x30] sm:$0xf]
    %v1028 = vld [vmem:[#allocation11 + $0x34] sm:$0xf]
    %v1029 = vld [vmem:[#allocation11 + $0x38] sm:$0xf]
    %v1030 = vld [vmem:[#allocation11 + $0x3c] sm:$0xf]
    %v1031 = vld [vmem:[%s8] sm:$0x1]
    %v1033 = vlaneseq
    %v1034 = vshrl.u32 %v1033, 7
    %v1035 = vsub.s32 0, %v1034
    %v1036 = vrot.slane %v1031, %v1035
    %v1054 = vunpack.c.l.b16 %v1015
    %v1055 = vunpack.c.l.b16 %v1016
    %v1056 = vunpack.c.l.b16 %v1017
    %v1057 = vunpack.c.l.b16 %v1018
    %v1058 = vunpack.c.l.b16 %v1019
    %v1059 = vunpack.c.l.b16 %v1020
    %v1060 = vunpack.c.l.b16 %v1021
    %v1061 = vunpack.c.l.b16 %v1022
    %v1062 = vunpack.c.l.b16 %v1023
    %v1063 = vunpack.c.l.b16 %v1024
    %v1064 = vunpack.c.l.b16 %v1025
    %v1065 = vunpack.c.l.b16 %v1026
    %v1066 = vunpack.c.l.b16 %v1027
    %v1067 = vunpack.c.l.b16 %v1028
    %v1068 = vunpack.c.l.b16 %v1029
    %v1069 = vunpack.c.l.b16 %v1030
    %v1070 = vpack.c.b16 %v1055, %v1054
    %v1071 = vpack.c.b16 %v1057, %v1056
    %v1072 = vpack.c.b16 %v1059, %v1058
    %v1073 = vpack.c.b16 %v1061, %v1060
    %v1074 = vpack.c.b16 %v1063, %v1062
    %v1075 = vpack.c.b16 %v1065, %v1064
    %v1076 = vpack.c.b16 %v1067, %v1066
    %v1077 = vpack.c.b16 %v1069, %v1068
    %1086 = vmatprep.subr.bf16.mxu0 0
    %1087 = vmatpush1.bf16.msra.mxu0 %v1077
    %1088 = vmatprep.subr.bf16.mxu0 0
    %1089 = vmatpush1.bf16.msra.mxu0 %v1076
    %1090 = vmatprep.subr.bf16.mxu0 0
    %1091 = vmatpush1.bf16.msra.mxu0 %v1075
    %1092 = vmatprep.subr.bf16.mxu0 0
    %1093 = vmatpush1.bf16.msra.mxu0 %v1074
    %1094 = vmatprep.subr.bf16.mxu0 0
    %1095 = vmatpush1.bf16.msra.mxu0 %v1073
    %1096 = vmatprep.subr.bf16.mxu0 0
    %1097 = vmatpush1.bf16.msra.mxu0 %v1072
    %1098 = vmatprep.subr.bf16.mxu0 0
    %1099 = vmatpush1.bf16.msra.mxu0 %v1071
    %1100 = vmatprep.subr.bf16.mxu0 0
    %1101 = vmatpush1.bf16.msra.mxu0 %v1070
    %1102 = vmatprep.subr.bf16.mxu0 0
    %1103 = vmatpush2.bf16.msra.mxu0 0
    %1104 = vmatprep.subr.bf16.mxu0 0
    %1105 = vmatpush2.bf16.msra.mxu0 0
    %1106 = vmatprep.subr.bf16.mxu0 0
    %1107 = vmatpush2.bf16.msra.mxu0 0
    %1108 = vmatprep.subr.bf16.mxu0 0
    %1109 = vmatpush2.bf16.msra.mxu0 0
    %1110 = vmatprep.subr.bf16.mxu0 0
    %1111 = vmatpush2.bf16.msra.mxu0 0
    %1112 = vmatprep.subr.bf16.mxu0 0
    %1113 = vmatpush2.bf16.msra.mxu0 0
    %1114 = vmatprep.subr.bf16.mxu0 0
    %1115 = vmatpush2.bf16.msra.mxu0 0
    %1116 = vmatprep.subr.bf16.mxu0 0
    %1117 = vmatpush2.bf16.msra.mxu0 0
    %1118 = vmatprep.mubr.bf16.mxu0 0
    %1119 = vmatmul.mubr.bf16.gmra.mxu0 %v1014
    %v1120 = vpop.f32.mrf.mxu0
    %v1121 = vadd.f32 %v1036, %v1120
    %v1122 = vpop.f32.mrf.mxu0
    %v1123 = vpop.f32.mrf.mxu0
    %v1124 = vpop.f32.mrf.mxu0
    %1125 = vdwg.mxu0
    %1126 = vmax.xlane.f32.xlu0 %v1121
    %v1127 = vpop.xlane.xlu0 %1126
    %v1128 = vsub.f32 %v1121, %v1127
    %v1129 = vmul.f32 %v1128, 1.442695
    %v1130 = vpow.pop %v1129
    %1131 = vadd.xlane.f32.xlu0 %v1130
    %v1132 = vpop.xlane.xlu0 %1131
    %v1133 = vlog2.pop %v1132
    %v1134 = vmul.f32 %v1133, 0.6931472
    %v1135 = vsub.f32 %v1128, %v1134
    %1136 = vst [vmem:[#allocation12] sm:$0xff] %v1135
    // Predicated region
    $region58: #{net_forward.1} parent=1 // pred_check
      _
    $region59: #{net_forward.1} parent=1 // pred_check_branch
      %1138 = sbr.rel (0) target = $region61
    $region60: #{net_forward.1} parent=1 // pred_region
      %s1140 = ssub.s32 128, 128
      %1141 = vsyncadd [#allocation5], %s1140
      %s1143 = sshll.u32 [#allocation12], 4
      %s1144 = int_to_ptr.vmem [resolvable:$true] %s1143
      %1146 = dma.vmem_to_hbm [thread:$0]  %s1144, 128, %s9, [#allocation5]
    $region61: #{net_forward.1} parent=1 // pred_fallthru
      _
    // Predicated region
    $region62: #{net_forward.1} parent=1 // pred_check
      _
    $region63: #{net_forward.1} parent=1 // pred_check_branch
      %1148 = sbr.rel (0) target = $region65
    $region64: #{net_forward.1} parent=1 // pred_region
      %1149 = dma.done [#allocation5], 128
    $region65: #{net_forward.1} parent=1 // pred_fallthru
      _
    %1150 = vsyncpa [#allocation4], 1
    %1151 = vsyncpa [#allocation7], 1
    %1152 = vsyncpa [#allocation10], 1
    %1153 = vsyncpa [#allocation5], 1

</llo_original>
